<compile_context>
chip_gen: v5e
topology: v5e:2x2
jax: 0.10.0
libtpu: 0.0.40
codegen_flags: <defaults>
</compile_context>

<pallas_src>
import jax
import jax.numpy as jnp
from jax.experimental import pallas as pl
from jax.experimental.pallas import tpu as pltpu


# ----------------------------- helpers ------------------------------------- #

def _vmem_limit_bytes() -> int:
    """Scoped VMEM limit: ~3/4 of physical (128 MiB v5e/v6e, 64 MiB/TC v7x)."""
    try:
        cap = pltpu.get_tpu_info().vmem_capacity_bytes
    except Exception:  # fall back conservatively (safe on all generations)
        cap = 64 * 1024 * 1024
    return int(cap) * 3 // 4


def _pick_tile(total: int, preferred: int, align: int = 8) -> int:
    """Largest tile <= preferred that divides `total`, preferring multiples of
    `align` (sublane-friendly).  Returns `total` if it already fits."""
    if total <= preferred:
        return total
    t = (preferred // align) * align
    while t >= align:
        if total % t == 0:
            return t
        t -= align
    for t in range(min(preferred, total), 0, -1):
        if total % t == 0:
            return t
    return 1


# ----------------------------- kernels ------------------------------------- #

def _tdo_cls_kernel(x_ref, wd_ref, bd_ref, o_ref):
    """Row-tiled dense + tanh.

    x_ref : [TM, H]   wd_ref: [H, H]   bd_ref: [1, H]   o_ref: [TM, H]
    """
    y = jnp.dot(x_ref[...], wd_ref[...], preferred_element_type=jnp.float32)
    o_ref[...] = jnp.tanh(y + bd_ref[...]).astype(o_ref.dtype)


def _tdo_attentive_kernel(x_ref, wv_ref, bv_ref, wd_ref, bd_ref, o_ref,
                          m_sc, l_sc, acc_sc):
    """Batch-blocked, sequence-tiled attentive pooling with online softmax.

    x_ref : [Bt, TS, H]   wv_ref: [1, H]   bv_ref: [1, 1]
    wd_ref: [H, H]        bd_ref: [1, H]   o_ref : [Bt, H]
    scratch: m_sc/l_sc [Bt,1,1] f32, acc_sc [Bt,1,H] f32 (persist over seq axis)
    """
    si = pl.program_id(1)

    @pl.when(si == 0)
    def _():
        m_sc[...] = jnp.full_like(m_sc, -jnp.inf)
        l_sc[...] = jnp.zeros_like(l_sc)
        acc_sc[...] = jnp.zeros_like(acc_sc)

    x = x_ref[...].astype(jnp.float32)                                # [Bt,TS,H]

    # Folded score projection: tanh(x @ (w_lin @ v) + b_lin @ v), computed as a
    # VPU elementwise multiply + lane reduction (avoids an N=1 MXU matmul).
    s = jnp.tanh(jnp.sum(x * wv_ref[...], axis=-1, keepdims=True)
                 + bv_ref[...])                                       # [Bt,TS,1]

    # Online softmax over the sequence axis (flash-style rescaling).
    m_prev = m_sc[...]                                                # [Bt,1,1]
    m_new = jnp.maximum(m_prev, jnp.max(s, axis=1, keepdims=True))    # [Bt,1,1]
    alpha = jnp.exp(m_prev - m_new)                                   # [Bt,1,1]
    p = jnp.exp(s - m_new)                                            # [Bt,TS,1]
    l_sc[...] = alpha * l_sc[...] + jnp.sum(p, axis=1, keepdims=True)
    acc_sc[...] = alpha * acc_sc[...] + jnp.sum(p * x, axis=1, keepdims=True)
    m_sc[...] = m_new

    @pl.when(si == pl.num_programs(1) - 1)
    def _():
        # Normalize once at finalize; approx reciprocal runs on the EUP slot.
        pooled = acc_sc[...] * pl.reciprocal(l_sc[...], approx=True)  # [Bt,1,H]
        pooled = pooled[:, 0, :]                                      # [Bt,H]
        out = jnp.tanh(
            jnp.dot(pooled, wd_ref[...], preferred_element_type=jnp.float32)
            + bd_ref[...])
        o_ref[...] = out.astype(o_ref.dtype)


# ----------------------------- wrappers ------------------------------------ #

def tdo_pooler_cls(hidden_states, params, *, block_rows=512):
    """pooling='cls': tanh(dense(hidden_states)) over every position."""
    B, S, H = hidden_states.shape
    rows = B * S
    x2d = hidden_states.reshape(rows, H)
    tm = _pick_tile(rows, block_rows)

    out = pl.pallas_call(
        _tdo_cls_kernel,
        out_shape=jax.ShapeDtypeStruct((rows, H), hidden_states.dtype),
        grid=(rows // tm,),
        in_specs=[
            pl.BlockSpec((tm, H), lambda i: (i, 0)),     # activations (row tile)
            pl.BlockSpec((H, H), lambda i: (0, 0)),      # dense weight (resident)
            pl.BlockSpec((1, H), lambda i: (0, 0)),      # dense bias   (resident)
        ],
        out_specs=pl.BlockSpec((tm, H), lambda i: (i, 0)),
        compiler_params=pltpu.CompilerParams(
            dimension_semantics=("parallel",),
            vmem_limit_bytes=_vmem_limit_bytes(),
        ),
    )(x2d, params["w_dense"], params["b_dense"])
    return out.reshape(B, S, H)


def tdo_pooler_attentive(hidden_states, params, *, block_batch=256, block_seq=512):
    """pooling='attentive': attention pooling over seq, then dense + tanh."""
    B, S, H = hidden_states.shape

    # Exact algebraic fold of the v projection into lin_proj:
    #   tanh((x @ W + b) @ v) == tanh(x @ (W @ v) + b @ v)
    w_v = jnp.dot(params["w_lin"].astype(jnp.float32),
                  params["v"].astype(jnp.float32)).reshape(1, H)      # [1, H]
    b_v = jnp.dot(params["b_lin"].astype(jnp.float32),
                  params["v"].astype(jnp.float32)).reshape(1, 1)      # [1, 1]

    bt = _pick_tile(B, block_batch)
    ts = _pick_tile(S, block_seq)

    return pl.pallas_call(
        _tdo_attentive_kernel,
        out_shape=jax.ShapeDtypeStruct((B, H), hidden_states.dtype),
        grid=(B // bt, S // ts),
        in_specs=[
            pl.BlockSpec((bt, ts, H), lambda bi, si: (bi, si, 0)),    # activations
            pl.BlockSpec((1, H), lambda bi, si: (0, 0)),              # folded w_v
            pl.BlockSpec((1, 1), lambda bi, si: (0, 0)),              # folded b_v
            pl.BlockSpec((H, H), lambda bi, si: (0, 0)),              # dense weight
            pl.BlockSpec((1, H), lambda bi, si: (0, 0)),              # dense bias
        ],
        out_specs=pl.BlockSpec((bt, H), lambda bi, si: (bi, 0)),
        scratch_shapes=[
            pltpu.VMEM((bt, 1, 1), jnp.float32),   # running max
            pltpu.VMEM((bt, 1, 1), jnp.float32),   # running denom
            pltpu.VMEM((bt, 1, H), jnp.float32),   # pooled accumulator
        ],
        compiler_params=pltpu.CompilerParams(
            dimension_semantics=("parallel", "arbitrary"),
            vmem_limit_bytes=_vmem_limit_bytes(),
        ),
    )(hidden_states, w_v, b_v, params["w_dense"], params["b_dense"])


# ----------------------------- reference (plain JAX) ----------------------- #

def _ref_attentive(x, p):
    lin = x @ p["w_lin"] + p["b_lin"][0]                    # [B, S, H]
    aw = jnp.tanh(lin @ p["v"])[..., 0]                     # [B, S]
    awn = jax.nn.softmax(aw, axis=-1)                       # [B, S]
    pooled = jnp.sum(awn[..., None] * x, axis=1)            # [B, H]
    return jnp.tanh(pooled @ p["w_dense"] + p["b_dense"][0])


def _ref_cls(x, p):
    return jnp.tanh(x @ p["w_dense"] + p["b_dense"][0])


# ----------------------------- main ----------------------------------------- #

if __name__ == "__main__":
    B, S, H = 2, 8, 32
    key = jax.random.PRNGKey(0)
    kx, k1, k2, k3, k4, k5 = jax.random.split(key, 6)

    scale = 1.0 / (H ** 0.5)
    hidden_states = jax.random.normal(kx, (B, S, H), dtype=jnp.float32)
    params = {
        # AttentivePooling.lin_proj: Linear(H, H)
        "w_lin": jax.random.uniform(k1, (H, H), jnp.float32, -scale, scale),
        "b_lin": jax.random.uniform(k2, (1, H), jnp.float32, -scale, scale),
        # AttentivePooling.v: Linear(H, 1, bias=False)
        "v": jax.random.uniform(k3, (H, 1), jnp.float32, -scale, scale),
        # TDOPooler.dense: Linear(H, H)
        "w_dense": jax.random.uniform(k4, (H, H), jnp.float32, -scale, scale),
        "b_dense": jax.random.uniform(k5, (1, H), jnp.float32, -scale, scale),
    }

    # pooling='cls' (module default): dense + tanh over every position
    out_cls = jax.block_until_ready(tdo_pooler_cls(hidden_states, params))
    ref_cls = _ref_cls(hidden_states, params)
    assert out_cls.shape == (B, S, H)
    assert jnp.allclose(out_cls, ref_cls, atol=1e-5, rtol=1e-5)

    # pooling='attentive': attention pooling over seq, then dense + tanh
    # (tolerance loosened slightly: approx EUP reciprocal + folded-v reassociation)
    out_att = jax.block_until_ready(tdo_pooler_attentive(hidden_states, params))
    ref_att = _ref_attentive(hidden_states, params)
    assert out_att.shape == (B, H)
    assert jnp.allclose(out_att, ref_att, atol=2e-3, rtol=2e-3)

    print("KERNEL_OK")
</pallas_src>

<mosaic_0001>
module attributes {stable_mosaic.version = 11 : i64} {
  func.func @_tdo_cls_kernel(%arg0: i32, %arg1: memref<16x32xf32, #tpu.memory_space<vmem>>, %arg2: memref<32x32xf32, #tpu.memory_space<vmem>>, %arg3: memref<1x32xf32, #tpu.memory_space<vmem>>, %arg4: memref<16x32xf32, #tpu.memory_space<vmem>>) attributes {dimension_semantics = [#tpu.dimension_semantics<parallel>], iteration_bounds = array<i64: 1>, scalar_prefetch = 0 : i64, scratch_operands = 0 : i64, tpu.core_type = #tpu.core_type<tc>, window_params = [{transform_indices = @transform_0, window_bounds = array<i64: 16, 32>}, {pipeline_mode = #tpu.pipeline_mode<synchronous>, transform_indices = @transform_1, window_bounds = array<i64: 32, 32>}, {pipeline_mode = #tpu.pipeline_mode<synchronous>, transform_indices = @transform_2, window_bounds = array<i64: 1, 32>}, {transform_indices = @transform_3, window_bounds = array<i64: 16, 32>}]} {
    %c0 = arith.constant 0 : index
    %c0_0 = arith.constant 0 : index
    %0 = vector.load %arg1[%c0, %c0_0] : memref<16x32xf32, #tpu.memory_space<vmem>>, vector<16x32xf32>
    %c0_1 = arith.constant 0 : index
    %c0_2 = arith.constant 0 : index
    %1 = vector.load %arg2[%c0_1, %c0_2] : memref<32x32xf32, #tpu.memory_space<vmem>>, vector<32x32xf32>
    %cst = arith.constant dense<0.000000e+00> : vector<16x32xf32>
    %2 = tpu.matmul %0, %1, %cst {dimension_numbers = #tpu.dot_dimension_numbers<[1], [0], [0], [1], [0, 0, 1, 1], [], []>} : vector<16x32xf32>, vector<32x32xf32>, vector<16x32xf32> -> vector<16x32xf32>
    %c0_3 = arith.constant 0 : index
    %c0_4 = arith.constant 0 : index
    %3 = vector.load %arg3[%c0_3, %c0_4] : memref<1x32xf32, #tpu.memory_space<vmem>>, vector<1x32xf32>
    %4 = vector.broadcast %3 : vector<1x32xf32> to vector<16x32xf32>
    %5 = arith.addf %2, %4 : vector<16x32xf32>
    %6 = math.tanh %5 : vector<16x32xf32>
    %c0_5 = arith.constant 0 : index
    %c0_6 = arith.constant 0 : index
    %7 = vector.load %arg4[%c0_5, %c0_6] : memref<16x32xf32, #tpu.memory_space<vmem>>, vector<16x32xf32>
    tpu.vector_store %arg4[%c0_5, %c0_6], %6 {strides = array<i32>} : memref<16x32xf32, #tpu.memory_space<vmem>>, vector<16x32xf32>,
    return
  }
  func.func @transform_0(%arg0: i32) -> (i32, i32) {
    %c0_i32 = arith.constant 0 : i32
    %c0_i32_0 = arith.constant 0 : i32
    return %arg0, %c0_i32 : i32, i32
  }
  func.func @transform_1(%arg0: i32) -> (i32, i32) {
    %c0_i32 = arith.constant 0 : i32
    %c0_i32_0 = arith.constant 0 : i32
    %c0_i32_1 = arith.constant 0 : i32
    return %c0_i32, %c0_i32_0 : i32, i32
  }
  func.func @transform_2(%arg0: i32) -> (i32, i32) {
    %c0_i32 = arith.constant 0 : i32
    %c0_i32_0 = arith.constant 0 : i32
    %c0_i32_1 = arith.constant 0 : i32
    return %c0_i32, %c0_i32_0 : i32, i32
  }
  func.func @transform_3(%arg0: i32) -> (i32, i32) {
    %c0_i32 = arith.constant 0 : i32
    %c0_i32_0 = arith.constant 0 : i32
    return %arg0, %c0_i32 : i32, i32
  }
}

</mosaic_0001>

<llo_original>
// kernel: tpu_custom_call.1
$region0: #{tpu_custom_call.1}
  #allocation0 [shape = 'u32[]', space=smem, size = 0x4, offset = 0x4, fixed_abs, tag = 'smem constant byte address 0x4 - core index']
  #allocation1 [shape = 'u32[72,128]{1,0:T(1,128)}', space=vmem, size = 0x9000, scoped, tag = 'internal scratch']
  %s0 = inlined_call_operand.hbm [shape: f32[16,32], index: 0, kind: input, shape index: {}]
  %s1 = inlined_call_operand.hbm [shape: f32[32,32], index: 1, kind: input, shape index: {}]
  %s2 = inlined_call_operand.vmem [shape: f32[1,32], index: 2, kind: input, shape index: {}]
  %s3 = inlined_call_operand.hbm [shape: f32[16,32], index: 3, kind: output, shape index: {}]
  %s4 = sld [smem:[#allocation0]]
  $region30: #{tpu_custom_call.1} parent=0
    _
  %s6 = ssub.s32 1, %s4
  %s7 = scalar_select 0, %s6, %s4
  $region1: #{tpu_custom_call.1} parent=0
    #allocation2 [shape = 'u8[8192]{0}', space=vmem, size = 0x2000, scoped, tag = 'input window, operand 0, single buffered']
    #allocation3 [shape = 's32[1]{0}', space=sflag, size = 0x4, scoped, tag = 'scoped memory for tpu_custom_call.1']
    #allocation4 [shape = 's32[1]{0}', space=sflag, size = 0x4, scoped, tag = 'scoped memory for tpu_custom_call.1']
    #allocation5 [shape = 'u8[16384]{0}', space=vmem, size = 0x4000, scoped, tag = 'input window, operand 1, single buffered']
    #allocation6 [shape = 's32[1]{0}', space=sflag, size = 0x4, scoped, tag = 'scoped memory for tpu_custom_call.1']
    #allocation7 [shape = 'u8[8192]{0}', space=vmem, size = 0x2000, scoped, tag = 'output window, operand 0, single buffered']
    %8 = vsyncpa [#allocation3], 0
    %9 = vsyncpa [#allocation6], 0
    %10 = vsyncpa [#allocation4], 0
    // Predicated region
    $region2: #{tpu_custom_call.1} parent=1 // pred_check
      _
    $region3: #{tpu_custom_call.1} parent=1 // pred_check_branch
      %12 = sbr.rel (0) target = $region5
    $region4: #{tpu_custom_call.1} parent=1 // pred_region
      %14 = vsyncadd [#allocation3], 0
      %s15 = sshll.u32 %s0, 4
      %s16 = int_to_ptr.hbm [resolvable:$true] %s15
      %s17 = sshll.u32 [#allocation2], 4
      %s18 = int_to_ptr.vmem [resolvable:$true] %s17
      %23 = dma.hbm_to_vmem [thread:$0]  %s16, 256, %s18, [#allocation3], 128, 128, 8
    $region5: #{tpu_custom_call.1} parent=1 // pred_fallthru
      _
    // Predicated region
    $region6: #{tpu_custom_call.1} parent=1 // pred_check
      _
    $region7: #{tpu_custom_call.1} parent=1 // pred_check_branch
      %25 = sbr.rel (0) target = $region9
    $region8: #{tpu_custom_call.1} parent=1 // pred_region
      %27 = vsyncadd [#allocation6], 0
      %s28 = sshll.u32 %s1, 4
      %s29 = int_to_ptr.hbm [resolvable:$true] %s28
      %s30 = sshll.u32 [#allocation5], 4
      %s31 = int_to_ptr.vmem [resolvable:$true] %s30
      %36 = dma.hbm_to_vmem [thread:$0]  %s29, 512, %s31, [#allocation6], 128, 128, 8
    $region9: #{tpu_custom_call.1} parent=1 // pred_fallthru
      _
    // Predicated region
    $region10: #{tpu_custom_call.1} parent=1 // pred_check
      _
    $region11: #{tpu_custom_call.1} parent=1 // pred_check_branch
      %38 = sbr.rel (0) target = $region13
    $region12: #{tpu_custom_call.1} parent=1 // pred_region
      _
    $region13: #{tpu_custom_call.1} parent=1 // pred_fallthru
      _
    // Predicated region
    $region14: #{tpu_custom_call.1} parent=1 // pred_check
      _
    $region15: #{tpu_custom_call.1} parent=1 // pred_check_branch
      %40 = sbr.rel (0) target = $region17
    $region16: #{tpu_custom_call.1} parent=1 // pred_region
      %42 = dma.done [#allocation3], 256
    $region17: #{tpu_custom_call.1} parent=1 // pred_fallthru
      _
    // Predicated region
    $region18: #{tpu_custom_call.1} parent=1 // pred_check
      _
    $region19: #{tpu_custom_call.1} parent=1 // pred_check_branch
      %44 = sbr.rel (0) target = $region21
    $region20: #{tpu_custom_call.1} parent=1 // pred_region
      %46 = dma.done [#allocation6], 512
    $region21: #{tpu_custom_call.1} parent=1 // pred_fallthru
      _
    %v47 = vld [vmem:[#allocation2] sm:$0xff]
    %v48 = vld [vmem:[#allocation2 + $0x8] sm:$0xff]
    %v49 = vld [vmem:[#allocation5] sm:$0xff]
    %v50 = vld [vmem:[#allocation5 + $0x8] sm:$0xff]
    %v51 = vld [vmem:[#allocation5 + $0x10] sm:$0xff]
    %v52 = vld [vmem:[#allocation5 + $0x18] sm:$0xff]
    %v53 = vld [vmem:[%s2] sm:$0x1]
    %v55 = vperm.slane %v53, 0
    %vm57 = vcmask 261120
    %v59 = vsel %vm57, %v47, 0
    %v62 = vsel %vm57, %v48, 0
    %64 = vmatpush.msra.mxu0 0.0
    %65 = vmatpush.msra.mxu0 0.0
    %66 = vmatpush.msra.mxu0 0.0
    %67 = vmatpush.msra.mxu0 0.0
    %68 = vmatpush.msra.mxu0 0.0
    %69 = vmatpush.msra.mxu0 0.0
    %70 = vmatpush.msra.mxu0 0.0
    %71 = vmatpush.msra.mxu0 0.0
    %72 = vmatpush.msra.mxu0 0.0
    %73 = vmatpush.msra.mxu0 0.0
    %74 = vmatpush.msra.mxu0 0.0
    %75 = vmatpush.msra.mxu0 0.0
    %76 = vmatpush.msra.mxu0 %v52
    %77 = vmatpush.msra.mxu0 %v51
    %78 = vmatpush.msra.mxu0 %v50
    %79 = vmatpush.msra.mxu0 %v49
    %80 = vmatmul.f32.gmra.mxu0 %v59
    %v81 = vpop.f32.mrf.mxu0
    %v82 = vadd.f32 %v55, %v81
    %83 = vmatmul.f32.gmra.mxu0 %v62
    %v84 = vpop.f32.mrf.mxu0
    %v85 = vadd.f32 %v55, %v84
    %86 = vdwg.mxu0
    %v87 = vtanh.pop %v82
    %v88 = vtanh.pop %v85
    %89 = vst.msk [vmem:[#allocation7] sm:$0xff] %vm57, %v87
    %90 = vst.msk [vmem:[#allocation7 + $0x8] sm:$0xff] %vm57, %v88
    // Predicated region
    $region22: #{tpu_custom_call.1} parent=1 // pred_check
      _
    $region23: #{tpu_custom_call.1} parent=1 // pred_check_branch
      %92 = sbr.rel (0) target = $region25
    $region24: #{tpu_custom_call.1} parent=1 // pred_region
      %94 = vsyncadd [#allocation4], 0
      %s95 = sshll.u32 [#allocation7], 4
      %s96 = int_to_ptr.vmem [resolvable:$true] %s95
      %s97 = sshll.u32 %s3, 4
      %s98 = int_to_ptr.hbm [resolvable:$true] %s97
      %103 = dma.vmem_to_hbm [thread:$0]  %s96, 256, %s98, [#allocation4], 128, 128, 8
    $region25: #{tpu_custom_call.1} parent=1 // pred_fallthru
      _
    // Predicated region
    $region26: #{tpu_custom_call.1} parent=1 // pred_check
      _
    $region27: #{tpu_custom_call.1} parent=1 // pred_check_branch
      %105 = sbr.rel (0) target = $region29
    $region28: #{tpu_custom_call.1} parent=1 // pred_region
      %107 = dma.done [#allocation4], 256
    $region29: #{tpu_custom_call.1} parent=1 // pred_fallthru
      _
    %108 = vsyncpa [#allocation3], 1
    %109 = vsyncpa [#allocation6], 1
    %110 = vsyncpa [#allocation4], 1

</llo_original>
